<compile_context>
chip_gen: v6e
topology: v6e:2x2x1
jax: 0.10.0
libtpu: 0.0.40
codegen_flags: <defaults>
</compile_context>

<pallas_src>
import numpy as np
import jax
import jax.numpy as jnp
from jax.experimental import pallas as pl
from jax.experimental.pallas import tpu as pltpu

RHO = 150.0
RHO_SQ = RHO * RHO
DATA_WEIGHT = 1.0

NP_PAD = 8       # max keypoint groups per camera (hard cap, sublane-aligned)
NV_PAD = 128     # max gathered vertices per camera (hard cap, lane-aligned)
Z_PAD = 1.0e6    # padded-vertex depth: keeps 1/(z+tz) tiny and finite


def _round_up(n, m):
    return ((n + m - 1) // m) * m


def _choose_cam_block(num_cams):
    """Camera block: multiple of 32 (dense int8 tiling), <=512 (portable VMEM budget incl.
    v5e's 16 MiB default scope), and >=2 grid blocks when there is enough work (v7x megacore)."""
    c32 = _round_up(max(num_cams, 1), 32)
    if c32 <= 64:
        return 32
    half = _round_up((c32 + 1) // 2, 32)
    return min(512, half)


def _camera_init_loss_kernel(verts_ref, mask_ref, aux_ref, out_ref):
    # verts_ref : (3, CB, 128) f32   row0 = fx*(x+tx), row1 = fy*(y+ty), row2 = z+tz
    # mask_ref  : (8, CB, 128) int8  binary keypoint-group membership (0/1)
    # aux_ref   : (CB, 128)   f32    lanes 0:8 = 1/count, 8:16 = j2d_x - cx, 16:24 = j2d_y - cy,
    #                                lane 24 = data_weight^2 / num_points (0 for padded cameras)
    # out_ref   : (1, 8, 128) f32    per-block loss broadcast (lane-dense unmasked store)

    # 1) pinhole projection with intrinsics folded host-side: px = fx*(x+tx)/(z+tz)  (cx folded
    #    into j2d).  Exact reciprocal kept (approx=True would be ~free but the kernel stays
    #    HBM-bound anyway and exact keeps comfortable margin on the 1e-3 tolerance).
    inv_z = pl.reciprocal(verts_ref[2])              # (CB,128)
    px = verts_ref[0] * inv_z
    py = verts_ref[1] * inv_z

    aux = aux_ref[...]                               # (CB,128)
    cb = px.shape[0]
    total = jnp.zeros((cb, 1), jnp.float32)

    # 2+3) statically unrolled over the (<=8) keypoint groups so live temps stay (CB,128)/(CB,1):
    #      group sums = VPU multiply + XLU lane-reduce; then mean, residual and GMoF.
    for k in range(NP_PAD):
        m = mask_ref[k].astype(jnp.float32)                    # (CB,128) 0/1
        sx = jnp.sum(m * px, axis=-1, keepdims=True)           # (CB,1)
        sy = jnp.sum(m * py, axis=-1, keepdims=True)
        recip = aux[:, k:k + 1]                                # 1/count, 0 for padded keypoints
        dx = recip * sx - aux[:, 8 + k:9 + k]                  # mean_x - (j2d_x - cx)
        dy = recip * sy - aux[:, 16 + k:17 + k]                # mean_y - (j2d_y - cy)
        dx2 = dx * dx
        dy2 = dy * dy
        total = total + dx2 / (dx2 + RHO_SQ) + dy2 / (dy2 + RHO_SQ)

    # 4) per-camera weighting (data_weight^2 / num_points, 0 for padded cameras) and the
    #    in-block reduction over cameras; the tiny cross-block sum happens outside.
    per_cam = RHO_SQ * aux[:, 24:25] * total                   # (CB,1)
    out_ref[...] = jnp.broadcast_to(jnp.sum(per_cam), (1, NP_PAD, 128))


def camera_init_loss(verts, mask, aux, *, cam_block):
    """verts (3,Cp,NV_PAD) f32, mask (NP_PAD,Cp,NV_PAD) int8, aux (Cp,128) f32."""
    c_pad = aux.shape[0]
    assert c_pad % cam_block == 0
    assert cam_block % 32 == 0, "cam_block must be a multiple of 32 (int8 sublane tiling)"
    num_blocks = c_pad // cam_block

    partial = pl.pallas_call(
        _camera_init_loss_kernel,
        out_shape=jax.ShapeDtypeStruct((num_blocks, NP_PAD, 128), jnp.float32),
        grid=(num_blocks,),
        in_specs=[
            pl.BlockSpec((3, cam_block, NV_PAD), lambda b: (0, b, 0)),       # folded vertices
            pl.BlockSpec((NP_PAD, cam_block, NV_PAD), lambda b: (0, b, 0)),  # int8 binary mask
            pl.BlockSpec((cam_block, 128), lambda b: (b, 0)),                # per-camera scalars
        ],
        out_specs=pl.BlockSpec((1, NP_PAD, 128), lambda b: (b, 0, 0)),
        compiler_params=pltpu.CompilerParams(
            dimension_semantics=("parallel",),          # no cross-step state -> megacore-safe
            vmem_limit_bytes=32 * 1024 * 1024,          # ~3 KiB/cam x 2 bufs x 512 cams << 32 MiB
        ),
    )(verts, mask, aux)

    # Each block wrote its own (already weighted) loss; padded cameras/keypoints contribute 0.
    return jnp.sum(partial[:, 0, 0]).reshape((1,))      # match torch's (1,) joint_loss


# ----------------------------- host-side glue / reference -----------------------------

def _pinhole_np(v3, fx, fy, cx, cy, tx, ty, tz):
    z = v3[:, 2] + tz
    px = fx * (v3[:, 0] + tx) / z + cx
    py = fy * (v3[:, 1] + ty) / z + cy
    return np.stack([px, py], axis=1)


def _per_camera_selection(landmarks, init_set, key_vids0):
    visible = landmarks[:, 2].astype(bool)
    use_ids = [j for j in range(landmarks.shape[0]) if visible[j] and j in init_set]
    visible_vids = np.hstack([key_vids0[j].astype(int) for j in use_ids])
    group = np.hstack([idx * np.ones(len(key_vids0[rid])) for idx, rid in enumerate(use_ids)])
    assignments = np.vstack([group == j for j in np.arange(group[-1] + 1)])
    return use_ids, visible_vids, assignments


def reference_forward(verts_np, gt_np, conf_np, init_set, key_vids0, cam_params):
    joint_loss = 0.0
    for ci in range(gt_np.shape[0]):
        landmarks = np.hstack([gt_np[ci][0], conf_np[ci].T])
        use_ids, visible_vids, assignments = _per_camera_selection(landmarks, init_set, key_vids0)
        num_points = len(use_ids)
        j2d = landmarks[use_ids, :2]
        proj = _pinhole_np(verts_np[0, visible_vids].astype(np.float64), *cam_params[ci])
        rows = np.vstack([proj[ch] if ch.sum() == 1 else proj[ch].mean(axis=0) for ch in assignments])
        diff = rows - j2d
        d2 = diff ** 2
        gmof = RHO_SQ * d2 / (d2 + RHO_SQ)
        joint_loss += (DATA_WEIGHT ** 2) * gmof.sum() / num_points
    return joint_loss


def build_kernel_inputs(verts_np, gt_np, conf_np, init_set, key_vids0, cam_params,
                        data_weight=DATA_WEIGHT):
    num_cams = gt_np.shape[0]
    cam_block = _choose_cam_block(num_cams)
    c_pad = _round_up(max(num_cams, cam_block), cam_block)

    verts_all = np.zeros((3, c_pad, NV_PAD), np.float32)
    verts_all[2, :, :] = Z_PAD                       # safe depth for all padded vertex lanes / cams
    mask_all = np.zeros((NP_PAD, c_pad, NV_PAD), np.int8)
    aux_all = np.zeros((c_pad, 128), np.float32)

    for ci in range(num_cams):
        landmarks = np.hstack([gt_np[ci][0], conf_np[ci].T])
        use_ids, visible_vids, assignments = _per_camera_selection(landmarks, init_set, key_vids0)
        num_points = len(use_ids)
        num_vids = len(visible_vids)
        assert num_points <= NP_PAD, f"visible init keypoints {num_points} exceed NP_PAD={NP_PAD}"
        assert num_vids <= NV_PAD, f"gathered vertex ids {num_vids} exceed NV_PAD={NV_PAD}"

        fx, fy, cx, cy, tx, ty, tz = cam_params[ci]

        # Fold intrinsics/extrinsics into the gathered vertices (f64 accumulation, f32 storage).
        vsel = verts_np[0, visible_vids, :].astype(np.float64)       # (num_vids, 3)
        verts_all[0, ci, :num_vids] = fx * (vsel[:, 0] + tx)
        verts_all[1, ci, :num_vids] = fy * (vsel[:, 1] + ty)
        verts_all[2, ci, :num_vids] = vsel[:, 2] + tz

        # Strictly binary membership mask (group-mean reciprocal stays in f32 in `aux`).
        mask_all[:num_points, ci, :num_vids] = assignments.astype(np.int8)

        counts = assignments.sum(axis=1).astype(np.float64)
        j2d = landmarks[use_ids, :2].astype(np.float64)
        aux_all[ci, 0:num_points] = 1.0 / counts
        aux_all[ci, 8:8 + num_points] = j2d[:, 0] - cx               # cx/cy folded into targets
        aux_all[ci, 16:16 + num_points] = j2d[:, 1] - cy
        aux_all[ci, 24] = (data_weight ** 2) / num_points            # rebuild if data_weight changes

    return (jnp.asarray(verts_all), jnp.asarray(mask_all), jnp.asarray(aux_all), cam_block)


if __name__ == "__main__":
    C = 2      # number of cameras
    V = 64     # mesh vertices
    J = 8      # keypoints / joints

    key = jax.random.PRNGKey(0)
    k1, k2, k3 = jax.random.split(key, 3)

    vertices = jax.random.uniform(k1, (1, V, 3), minval=-1.0, maxval=1.0)
    vertices = vertices.at[..., 2].add(3.0)                       # keep z positive
    gt_joints = jax.random.uniform(k2, (C, 1, J, 2), minval=0.0, maxval=200.0)
    joints_conf = (jax.random.uniform(k3, (C, 1, J)) > 0.3).astype(jnp.float32)
    joints_conf = joints_conf.at[:, :, 0].set(1.0)                # ensure at least one visible joint

    init_joints_idxs = np.array([0, 1, 2, 3, 4, 5], dtype=np.int64)
    init_set = set(init_joints_idxs.tolist())

    rs = np.random.RandomState(0)
    key_vids0 = [rs.choice(V, size=rs.randint(1, 4), replace=False) for _ in range(J)]

    cam_params = [
        (100.0, 100.0, 96.0, 96.0, 0.10, -0.05, 0.5),
        (110.0, 105.0, 100.0, 90.0, -0.10, 0.05, 0.8),
    ]

    verts_np = np.asarray(vertices, dtype=np.float32)
    gt_np = np.asarray(gt_joints, dtype=np.float32)
    conf_np = np.asarray(joints_conf, dtype=np.float32)

    verts_j, mask_j, aux_j, cam_block = build_kernel_inputs(
        verts_np, gt_np, conf_np, init_set, key_vids0, cam_params)

    out = camera_init_loss(verts_j, mask_j, aux_j, cam_block=cam_block)
    out = jax.block_until_ready(out)

    ref = reference_forward(verts_np, gt_np, conf_np, init_set, key_vids0, cam_params)
    assert np.allclose(np.asarray(out)[0], ref, rtol=1e-3, atol=1e-3), (out, ref)

    print("KERNEL_OK")
</pallas_src>

<mosaic_0001>
module attributes {stable_mosaic.version = 11 : i64} {
  func.func @_camera_init_loss_kernel(%arg0: i32, %arg1: memref<3x32x128xf32, #tpu.memory_space<vmem>>, %arg2: memref<8x32x128xi8, #tpu.memory_space<vmem>>, %arg3: memref<32x128xf32, #tpu.memory_space<vmem>>, %arg4: memref<1x8x128xf32, #tpu.memory_space<vmem>>) attributes {dimension_semantics = [#tpu.dimension_semantics<parallel>], iteration_bounds = array<i64: 1>, scalar_prefetch = 0 : i64, scratch_operands = 0 : i64, tpu.core_type = #tpu.core_type<tc>, window_params = [{transform_indices = @transform_0, window_bounds = array<i64: 3, 32, 128>}, {transform_indices = @transform_1, window_bounds = array<i64: 8, 32, 128>}, {transform_indices = @transform_2, window_bounds = array<i64: 32, 128>}, {transform_indices = @transform_3, window_bounds = array<i64: 1, 8, 128>}]} {
    %c2 = arith.constant 2 : index
    %c0 = arith.constant 0 : index
    %c0_0 = arith.constant 0 : index
    %0 = vector.load %arg1[%c2, %c0, %c0_0] : memref<3x32x128xf32, #tpu.memory_space<vmem>>, vector<1x32x128xf32>
    %1 = vector.shape_cast %0 : vector<1x32x128xf32> to vector<32x128xf32>
    %2 = tpu.reciprocal %1 : vector<32x128xf32> -> vector<32x128xf32>
    %c0_1 = arith.constant 0 : index
    %c0_2 = arith.constant 0 : index
    %c0_3 = arith.constant 0 : index
    %3 = vector.load %arg1[%c0_1, %c0_2, %c0_3] : memref<3x32x128xf32, #tpu.memory_space<vmem>>, vector<1x32x128xf32>
    %4 = vector.shape_cast %3 : vector<1x32x128xf32> to vector<32x128xf32>
    %5 = arith.mulf %4, %2 : vector<32x128xf32>
    %c1 = arith.constant 1 : index
    %c0_4 = arith.constant 0 : index
    %c0_5 = arith.constant 0 : index
    %6 = vector.load %arg1[%c1, %c0_4, %c0_5] : memref<3x32x128xf32, #tpu.memory_space<vmem>>, vector<1x32x128xf32>
    %7 = vector.shape_cast %6 : vector<1x32x128xf32> to vector<32x128xf32>
    %8 = arith.mulf %7, %2 : vector<32x128xf32>
    %c0_6 = arith.constant 0 : index
    %c0_7 = arith.constant 0 : index
    %9 = vector.load %arg3[%c0_6, %c0_7] : memref<32x128xf32, #tpu.memory_space<vmem>>, vector<32x128xf32>
    %cst = arith.constant 0.000000e+00 : f32
    %10 = vector.broadcast %cst : f32 to vector<32x1xf32>
    %c0_8 = arith.constant 0 : index
    %c0_9 = arith.constant 0 : index
    %c0_10 = arith.constant 0 : index
    %11 = vector.load %arg2[%c0_8, %c0_9, %c0_10] : memref<8x32x128xi8, #tpu.memory_space<vmem>>, vector<1x32x128xi8>
    %12 = vector.shape_cast %11 : vector<1x32x128xi8> to vector<32x128xi8>
    %13 = arith.sitofp %12 : vector<32x128xi8> to vector<32x128xf32>
    %14 = arith.mulf %13, %5 : vector<32x128xf32>
    %cst_11 = arith.constant dense<0.000000e+00> : vector<32xf32>
    %15 = vector.multi_reduction <add>, %14, %cst_11 [1] : vector<32x128xf32> to vector<32xf32>
    %16 = vector.shape_cast %15 : vector<32xf32> to vector<32x1xf32>
    %17 = arith.mulf %13, %8 : vector<32x128xf32>
    %cst_12 = arith.constant dense<0.000000e+00> : vector<32xf32>
    %18 = vector.multi_reduction <add>, %17, %cst_12 [1] : vector<32x128xf32> to vector<32xf32>
    %19 = vector.shape_cast %18 : vector<32xf32> to vector<32x1xf32>
    %20 = vector.extract_strided_slice %9 {offsets = [0, 0], sizes = [32, 1], strides = [1, 1]} : vector<32x128xf32> to vector<32x1xf32>
    %21 = arith.mulf %20, %16 : vector<32x1xf32>
    %22 = vector.extract_strided_slice %9 {offsets = [0, 8], sizes = [32, 1], strides = [1, 1]} : vector<32x128xf32> to vector<32x1xf32>
    %23 = arith.subf %21, %22 : vector<32x1xf32>
    %24 = arith.mulf %20, %19 : vector<32x1xf32>
    %25 = vector.extract_strided_slice %9 {offsets = [0, 16], sizes = [32, 1], strides = [1, 1]} : vector<32x128xf32> to vector<32x1xf32>
    %26 = arith.subf %24, %25 : vector<32x1xf32>
    %27 = arith.mulf %23, %23 : vector<32x1xf32>
    %28 = arith.mulf %26, %26 : vector<32x1xf32>
    %cst_13 = arith.constant 2.250000e+04 : f32
    %29 = vector.broadcast %cst_13 : f32 to vector<32x1xf32>
    %30 = arith.addf %27, %29 : vector<32x1xf32>
    %31 = arith.divf %27, %30 : vector<32x1xf32>
    %32 = arith.addf %10, %31 : vector<32x1xf32>
    %cst_14 = arith.constant 2.250000e+04 : f32
    %33 = vector.broadcast %cst_14 : f32 to vector<32x1xf32>
    %34 = arith.addf %28, %33 : vector<32x1xf32>
    %35 = arith.divf %28, %34 : vector<32x1xf32>
    %36 = arith.addf %32, %35 : vector<32x1xf32>
    %c1_15 = arith.constant 1 : index
    %c0_16 = arith.constant 0 : index
    %c0_17 = arith.constant 0 : index
    %37 = vector.load %arg2[%c1_15, %c0_16, %c0_17] : memref<8x32x128xi8, #tpu.memory_space<vmem>>, vector<1x32x128xi8>
    %38 = vector.shape_cast %37 : vector<1x32x128xi8> to vector<32x128xi8>
    %39 = arith.sitofp %38 : vector<32x128xi8> to vector<32x128xf32>
    %40 = arith.mulf %39, %5 : vector<32x128xf32>
    %cst_18 = arith.constant dense<0.000000e+00> : vector<32xf32>
    %41 = vector.multi_reduction <add>, %40, %cst_18 [1] : vector<32x128xf32> to vector<32xf32>
    %42 = vector.shape_cast %41 : vector<32xf32> to vector<32x1xf32>
    %43 = arith.mulf %39, %8 : vector<32x128xf32>
    %cst_19 = arith.constant dense<0.000000e+00> : vector<32xf32>
    %44 = vector.multi_reduction <add>, %43, %cst_19 [1] : vector<32x128xf32> to vector<32xf32>
    %45 = vector.shape_cast %44 : vector<32xf32> to vector<32x1xf32>
    %46 = vector.extract_strided_slice %9 {offsets = [0, 1], sizes = [32, 1], strides = [1, 1]} : vector<32x128xf32> to vector<32x1xf32>
    %47 = arith.mulf %46, %42 : vector<32x1xf32>
    %48 = vector.extract_strided_slice %9 {offsets = [0, 9], sizes = [32, 1], strides = [1, 1]} : vector<32x128xf32> to vector<32x1xf32>
    %49 = arith.subf %47, %48 : vector<32x1xf32>
    %50 = arith.mulf %46, %45 : vector<32x1xf32>
    %51 = vector.extract_strided_slice %9 {offsets = [0, 17], sizes = [32, 1], strides = [1, 1]} : vector<32x128xf32> to vector<32x1xf32>
    %52 = arith.subf %50, %51 : vector<32x1xf32>
    %53 = arith.mulf %49, %49 : vector<32x1xf32>
    %54 = arith.mulf %52, %52 : vector<32x1xf32>
    %cst_20 = arith.constant 2.250000e+04 : f32
    %55 = vector.broadcast %cst_20 : f32 to vector<32x1xf32>
    %56 = arith.addf %53, %55 : vector<32x1xf32>
    %57 = arith.divf %53, %56 : vector<32x1xf32>
    %58 = arith.addf %36, %57 : vector<32x1xf32>
    %cst_21 = arith.constant 2.250000e+04 : f32
    %59 = vector.broadcast %cst_21 : f32 to vector<32x1xf32>
    %60 = arith.addf %54, %59 : vector<32x1xf32>
    %61 = arith.divf %54, %60 : vector<32x1xf32>
    %62 = arith.addf %58, %61 : vector<32x1xf32>
    %c2_22 = arith.constant 2 : index
    %c0_23 = arith.constant 0 : index
    %c0_24 = arith.constant 0 : index
    %63 = vector.load %arg2[%c2_22, %c0_23, %c0_24] : memref<8x32x128xi8, #tpu.memory_space<vmem>>, vector<1x32x128xi8>
    %64 = vector.shape_cast %63 : vector<1x32x128xi8> to vector<32x128xi8>
    %65 = arith.sitofp %64 : vector<32x128xi8> to vector<32x128xf32>
    %66 = arith.mulf %65, %5 : vector<32x128xf32>
    %cst_25 = arith.constant dense<0.000000e+00> : vector<32xf32>
    %67 = vector.multi_reduction <add>, %66, %cst_25 [1] : vector<32x128xf32> to vector<32xf32>
    %68 = vector.shape_cast %67 : vector<32xf32> to vector<32x1xf32>
    %69 = arith.mulf %65, %8 : vector<32x128xf32>
    %cst_26 = arith.constant dense<0.000000e+00> : vector<32xf32>
    %70 = vector.multi_reduction <add>, %69, %cst_26 [1] : vector<32x128xf32> to vector<32xf32>
    %71 = vector.shape_cast %70 : vector<32xf32> to vector<32x1xf32>
    %72 = vector.extract_strided_slice %9 {offsets = [0, 2], sizes = [32, 1], strides = [1, 1]} : vector<32x128xf32> to vector<32x1xf32>
    %73 = arith.mulf %72, %68 : vector<32x1xf32>
    %74 = vector.extract_strided_slice %9 {offsets = [0, 10], sizes = [32, 1], strides = [1, 1]} : vector<32x128xf32> to vector<32x1xf32>
    %75 = arith.subf %73, %74 : vector<32x1xf32>
    %76 = arith.mulf %72, %71 : vector<32x1xf32>
    %77 = vector.extract_strided_slice %9 {offsets = [0, 18], sizes = [32, 1], strides = [1, 1]} : vector<32x128xf32> to vector<32x1xf32>
    %78 = arith.subf %76, %77 : vector<32x1xf32>
    %79 = arith.mulf %75, %75 : vector<32x1xf32>
    %80 = arith.mulf %78, %78 : vector<32x1xf32>
    %cst_27 = arith.constant 2.250000e+04 : f32
    %81 = vector.broadcast %cst_27 : f32 to vector<32x1xf32>
    %82 = arith.addf %79, %81 : vector<32x1xf32>
    %83 = arith.divf %79, %82 : vector<32x1xf32>
    %84 = arith.addf %62, %83 : vector<32x1xf32>
    %cst_28 = arith.constant 2.250000e+04 : f32
    %85 = vector.broadcast %cst_28 : f32 to vector<32x1xf32>
    %86 = arith.addf %80, %85 : vector<32x1xf32>
    %87 = arith.divf %80, %86 : vector<32x1xf32>
    %88 = arith.addf %84, %87 : vector<32x1xf32>
    %c3 = arith.constant 3 : index
    %c0_29 = arith.constant 0 : index
    %c0_30 = arith.constant 0 : index
    %89 = vector.load %arg2[%c3, %c0_29, %c0_30] : memref<8x32x128xi8, #tpu.memory_space<vmem>>, vector<1x32x128xi8>
    %90 = vector.shape_cast %89 : vector<1x32x128xi8> to vector<32x128xi8>
    %91 = arith.sitofp %90 : vector<32x128xi8> to vector<32x128xf32>
    %92 = arith.mulf %91, %5 : vector<32x128xf32>
    %cst_31 = arith.constant dense<0.000000e+00> : vector<32xf32>
    %93 = vector.multi_reduction <add>, %92, %cst_31 [1] : vector<32x128xf32> to vector<32xf32>
    %94 = vector.shape_cast %93 : vector<32xf32> to vector<32x1xf32>
    %95 = arith.mulf %91, %8 : vector<32x128xf32>
    %cst_32 = arith.constant dense<0.000000e+00> : vector<32xf32>
    %96 = vector.multi_reduction <add>, %95, %cst_32 [1] : vector<32x128xf32> to vector<32xf32>
    %97 = vector.shape_cast %96 : vector<32xf32> to vector<32x1xf32>
    %98 = vector.extract_strided_slice %9 {offsets = [0, 3], sizes = [32, 1], strides = [1, 1]} : vector<32x128xf32> to vector<32x1xf32>
    %99 = arith.mulf %98, %94 : vector<32x1xf32>
    %100 = vector.extract_strided_slice %9 {offsets = [0, 11], sizes = [32, 1], strides = [1, 1]} : vector<32x128xf32> to vector<32x1xf32>
    %101 = arith.subf %99, %100 : vector<32x1xf32>
    %102 = arith.mulf %98, %97 : vector<32x1xf32>
    %103 = vector.extract_strided_slice %9 {offsets = [0, 19], sizes = [32, 1], strides = [1, 1]} : vector<32x128xf32> to vector<32x1xf32>
    %104 = arith.subf %102, %103 : vector<32x1xf32>
    %105 = arith.mulf %101, %101 : vector<32x1xf32>
    %106 = arith.mulf %104, %104 : vector<32x1xf32>
    %cst_33 = arith.constant 2.250000e+04 : f32
    %107 = vector.broadcast %cst_33 : f32 to vector<32x1xf32>
    %108 = arith.addf %105, %107 : vector<32x1xf32>
    %109 = arith.divf %105, %108 : vector<32x1xf32>
    %110 = arith.addf %88, %109 : vector<32x1xf32>
    %cst_34 = arith.constant 2.250000e+04 : f32
    %111 = vector.broadcast %cst_34 : f32 to vector<32x1xf32>
    %112 = arith.addf %106, %111 : vector<32x1xf32>
    %113 = arith.divf %106, %112 : vector<32x1xf32>
    %114 = arith.addf %110, %113 : vector<32x1xf32>
    %c4 = arith.constant 4 : index
    %c0_35 = arith.constant 0 : index
    %c0_36 = arith.constant 0 : index
    %115 = vector.load %arg2[%c4, %c0_35, %c0_36] : memref<8x32x128xi8, #tpu.memory_space<vmem>>, vector<1x32x128xi8>
    %116 = vector.shape_cast %115 : vector<1x32x128xi8> to vector<32x128xi8>
    %117 = arith.sitofp %116 : vector<32x128xi8> to vector<32x128xf32>
    %118 = arith.mulf %117, %5 : vector<32x128xf32>
    %cst_37 = arith.constant dense<0.000000e+00> : vector<32xf32>
    %119 = vector.multi_reduction <add>, %118, %cst_37 [1] : vector<32x128xf32> to vector<32xf32>
    %120 = vector.shape_cast %119 : vector<32xf32> to vector<32x1xf32>
    %121 = arith.mulf %117, %8 : vector<32x128xf32>
    %cst_38 = arith.constant dense<0.000000e+00> : vector<32xf32>
    %122 = vector.multi_reduction <add>, %121, %cst_38 [1] : vector<32x128xf32> to vector<32xf32>
    %123 = vector.shape_cast %122 : vector<32xf32> to vector<32x1xf32>
    %124 = vector.extract_strided_slice %9 {offsets = [0, 4], sizes = [32, 1], strides = [1, 1]} : vector<32x128xf32> to vector<32x1xf32>
    %125 = arith.mulf %124, %120 : vector<32x1xf32>
    %126 = vector.extract_strided_slice %9 {offsets = [0, 12], sizes = [32, 1], strides = [1, 1]} : vector<32x128xf32> to vector<32x1xf32>
    %127 = arith.subf %125, %126 : vector<32x1xf32>
    %128 = arith.mulf %124, %123 : vector<32x1xf32>
    %129 = vector.extract_strided_slice %9 {offsets = [0, 20], sizes = [32, 1], strides = [1, 1]} : vector<32x128xf32> to vector<32x1xf32>
    %130 = arith.subf %128, %129 : vector<32x1xf32>
    %131 = arith.mulf %127, %127 : vector<32x1xf32>
    %132 = arith.mulf %130, %130 : vector<32x1xf32>
    %cst_39 = arith.constant 2.250000e+04 : f32
    %133 = vector.broadcast %cst_39 : f32 to vector<32x1xf32>
    %134 = arith.addf %131, %133 : vector<32x1xf32>
    %135 = arith.divf %131, %134 : vector<32x1xf32>
    %136 = arith.addf %114, %135 : vector<32x1xf32>
    %cst_40 = arith.constant 2.250000e+04 : f32
    %137 = vector.broadcast %cst_40 : f32 to vector<32x1xf32>
    %138 = arith.addf %132, %137 : vector<32x1xf32>
    %139 = arith.divf %132, %138 : vector<32x1xf32>
    %140 = arith.addf %136, %139 : vector<32x1xf32>
    %c5 = arith.constant 5 : index
    %c0_41 = arith.constant 0 : index
    %c0_42 = arith.constant 0 : index
    %141 = vector.load %arg2[%c5, %c0_41, %c0_42] : memref<8x32x128xi8, #tpu.memory_space<vmem>>, vector<1x32x128xi8>
    %142 = vector.shape_cast %141 : vector<1x32x128xi8> to vector<32x128xi8>
    %143 = arith.sitofp %142 : vector<32x128xi8> to vector<32x128xf32>
    %144 = arith.mulf %143, %5 : vector<32x128xf32>
    %cst_43 = arith.constant dense<0.000000e+00> : vector<32xf32>
    %145 = vector.multi_reduction <add>, %144, %cst_43 [1] : vector<32x128xf32> to vector<32xf32>
    %146 = vector.shape_cast %145 : vector<32xf32> to vector<32x1xf32>
    %147 = arith.mulf %143, %8 : vector<32x128xf32>
    %cst_44 = arith.constant dense<0.000000e+00> : vector<32xf32>
    %148 = vector.multi_reduction <add>, %147, %cst_44 [1] : vector<32x128xf32> to vector<32xf32>
    %149 = vector.shape_cast %148 : vector<32xf32> to vector<32x1xf32>
    %150 = vector.extract_strided_slice %9 {offsets = [0, 5], sizes = [32, 1], strides = [1, 1]} : vector<32x128xf32> to vector<32x1xf32>
    %151 = arith.mulf %150, %146 : vector<32x1xf32>
    %152 = vector.extract_strided_slice %9 {offsets = [0, 13], sizes = [32, 1], strides = [1, 1]} : vector<32x128xf32> to vector<32x1xf32>
    %153 = arith.subf %151, %152 : vector<32x1xf32>
    %154 = arith.mulf %150, %149 : vector<32x1xf32>
    %155 = vector.extract_strided_slice %9 {offsets = [0, 21], sizes = [32, 1], strides = [1, 1]} : vector<32x128xf32> to vector<32x1xf32>
    %156 = arith.subf %154, %155 : vector<32x1xf32>
    %157 = arith.mulf %153, %153 : vector<32x1xf32>
    %158 = arith.mulf %156, %156 : vector<32x1xf32>
    %cst_45 = arith.constant 2.250000e+04 : f32
    %159 = vector.broadcast %cst_45 : f32 to vector<32x1xf32>
    %160 = arith.addf %157, %159 : vector<32x1xf32>
    %161 = arith.divf %157, %160 : vector<32x1xf32>
    %162 = arith.addf %140, %161 : vector<32x1xf32>
    %cst_46 = arith.constant 2.250000e+04 : f32
    %163 = vector.broadcast %cst_46 : f32 to vector<32x1xf32>
    %164 = arith.addf %158, %163 : vector<32x1xf32>
    %165 = arith.divf %158, %164 : vector<32x1xf32>
    %166 = arith.addf %162, %165 : vector<32x1xf32>
    %c6 = arith.constant 6 : index
    %c0_47 = arith.constant 0 : index
    %c0_48 = arith.constant 0 : index
    %167 = vector.load %arg2[%c6, %c0_47, %c0_48] : memref<8x32x128xi8, #tpu.memory_space<vmem>>, vector<1x32x128xi8>
    %168 = vector.shape_cast %167 : vector<1x32x128xi8> to vector<32x128xi8>
    %169 = arith.sitofp %168 : vector<32x128xi8> to vector<32x128xf32>
    %170 = arith.mulf %169, %5 : vector<32x128xf32>
    %cst_49 = arith.constant dense<0.000000e+00> : vector<32xf32>
    %171 = vector.multi_reduction <add>, %170, %cst_49 [1] : vector<32x128xf32> to vector<32xf32>
    %172 = vector.shape_cast %171 : vector<32xf32> to vector<32x1xf32>
    %173 = arith.mulf %169, %8 : vector<32x128xf32>
    %cst_50 = arith.constant dense<0.000000e+00> : vector<32xf32>
    %174 = vector.multi_reduction <add>, %173, %cst_50 [1] : vector<32x128xf32> to vector<32xf32>
    %175 = vector.shape_cast %174 : vector<32xf32> to vector<32x1xf32>
    %176 = vector.extract_strided_slice %9 {offsets = [0, 6], sizes = [32, 1], strides = [1, 1]} : vector<32x128xf32> to vector<32x1xf32>
    %177 = arith.mulf %176, %172 : vector<32x1xf32>
    %178 = vector.extract_strided_slice %9 {offsets = [0, 14], sizes = [32, 1], strides = [1, 1]} : vector<32x128xf32> to vector<32x1xf32>
    %179 = arith.subf %177, %178 : vector<32x1xf32>
    %180 = arith.mulf %176, %175 : vector<32x1xf32>
    %181 = vector.extract_strided_slice %9 {offsets = [0, 22], sizes = [32, 1], strides = [1, 1]} : vector<32x128xf32> to vector<32x1xf32>
    %182 = arith.subf %180, %181 : vector<32x1xf32>
    %183 = arith.mulf %179, %179 : vector<32x1xf32>
    %184 = arith.mulf %182, %182 : vector<32x1xf32>
    %cst_51 = arith.constant 2.250000e+04 : f32
    %185 = vector.broadcast %cst_51 : f32 to vector<32x1xf32>
    %186 = arith.addf %183, %185 : vector<32x1xf32>
    %187 = arith.divf %183, %186 : vector<32x1xf32>
    %188 = arith.addf %166, %187 : vector<32x1xf32>
    %cst_52 = arith.constant 2.250000e+04 : f32
    %189 = vector.broadcast %cst_52 : f32 to vector<32x1xf32>
    %190 = arith.addf %184, %189 : vector<32x1xf32>
    %191 = arith.divf %184, %190 : vector<32x1xf32>
    %192 = arith.addf %188, %191 : vector<32x1xf32>
    %c7 = arith.constant 7 : index
    %c0_53 = arith.constant 0 : index
    %c0_54 = arith.constant 0 : index
    %193 = vector.load %arg2[%c7, %c0_53, %c0_54] : memref<8x32x128xi8, #tpu.memory_space<vmem>>, vector<1x32x128xi8>
    %194 = vector.shape_cast %193 : vector<1x32x128xi8> to vector<32x128xi8>
    %195 = arith.sitofp %194 : vector<32x128xi8> to vector<32x128xf32>
    %196 = arith.mulf %195, %5 : vector<32x128xf32>
    %cst_55 = arith.constant dense<0.000000e+00> : vector<32xf32>
    %197 = vector.multi_reduction <add>, %196, %cst_55 [1] : vector<32x128xf32> to vector<32xf32>
    %198 = vector.shape_cast %197 : vector<32xf32> to vector<32x1xf32>
    %199 = arith.mulf %195, %8 : vector<32x128xf32>
    %cst_56 = arith.constant dense<0.000000e+00> : vector<32xf32>
    %200 = vector.multi_reduction <add>, %199, %cst_56 [1] : vector<32x128xf32> to vector<32xf32>
    %201 = vector.shape_cast %200 : vector<32xf32> to vector<32x1xf32>
    %202 = vector.extract_strided_slice %9 {offsets = [0, 7], sizes = [32, 1], strides = [1, 1]} : vector<32x128xf32> to vector<32x1xf32>
    %203 = arith.mulf %202, %198 : vector<32x1xf32>
    %204 = vector.extract_strided_slice %9 {offsets = [0, 15], sizes = [32, 1], strides = [1, 1]} : vector<32x128xf32> to vector<32x1xf32>
    %205 = arith.subf %203, %204 : vector<32x1xf32>
    %206 = arith.mulf %202, %201 : vector<32x1xf32>
    %207 = vector.extract_strided_slice %9 {offsets = [0, 23], sizes = [32, 1], strides = [1, 1]} : vector<32x128xf32> to vector<32x1xf32>
    %208 = arith.subf %206, %207 : vector<32x1xf32>
    %209 = arith.mulf %205, %205 : vector<32x1xf32>
    %210 = arith.mulf %208, %208 : vector<32x1xf32>
    %cst_57 = arith.constant 2.250000e+04 : f32
    %211 = vector.broadcast %cst_57 : f32 to vector<32x1xf32>
    %212 = arith.addf %209, %211 : vector<32x1xf32>
    %213 = arith.divf %209, %212 : vector<32x1xf32>
    %214 = arith.addf %192, %213 : vector<32x1xf32>
    %cst_58 = arith.constant 2.250000e+04 : f32
    %215 = vector.broadcast %cst_58 : f32 to vector<32x1xf32>
    %216 = arith.addf %210, %215 : vector<32x1xf32>
    %217 = arith.divf %210, %216 : vector<32x1xf32>
    %218 = arith.addf %214, %217 : vector<32x1xf32>
    %219 = vector.extract_strided_slice %9 {offsets = [0, 24], sizes = [32, 1], strides = [1, 1]} : vector<32x128xf32> to vector<32x1xf32>
    %cst_59 = arith.constant 2.250000e+04 : f32
    %220 = vector.broadcast %cst_59 : f32 to vector<32x1xf32>
    %221 = arith.mulf %220, %219 : vector<32x1xf32>
    %222 = arith.mulf %221, %218 : vector<32x1xf32>
    %223 = vector.shape_cast %222 : vector<32x1xf32> to vector<1x32x1xf32>
    %cst_60 = arith.constant dense<0.000000e+00> : vector<1xf32>
    %224 = vector.multi_reduction <add>, %223, %cst_60 [1, 2] : vector<1x32x1xf32> to vector<1xf32>
    %225 = vector.shape_cast %224 : vector<1xf32> to vector<1x1x1xf32>
    %226 = vector.extract %225[0, 0, 0] : f32 from vector<1x1x1xf32>
    %227 = vector.broadcast %226 : f32 to vector<1x8x128xf32>
    %c0_61 = arith.constant 0 : index
    %c0_62 = arith.constant 0 : index
    %c0_63 = arith.constant 0 : index
    %228 = vector.load %arg4[%c0_61, %c0_62, %c0_63] : memref<1x8x128xf32, #tpu.memory_space<vmem>>, vector<1x8x128xf32>
    tpu.vector_store %arg4[%c0_61, %c0_62, %c0_63], %227 {strides = array<i32>} : memref<1x8x128xf32, #tpu.memory_space<vmem>>, vector<1x8x128xf32>,
    return
  }
  func.func @transform_0(%arg0: i32) -> (i32, i32, i32) {
    %c0_i32 = arith.constant 0 : i32
    %c0_i32_0 = arith.constant 0 : i32
    %c0_i32_1 = arith.constant 0 : i32
    return %c0_i32, %arg0, %c0_i32_0 : i32, i32, i32
  }
  func.func @transform_1(%arg0: i32) -> (i32, i32, i32) {
    %c0_i32 = arith.constant 0 : i32
    %c0_i32_0 = arith.constant 0 : i32
    %c0_i32_1 = arith.constant 0 : i32
    return %c0_i32, %arg0, %c0_i32_0 : i32, i32, i32
  }
  func.func @transform_2(%arg0: i32) -> (i32, i32) {
    %c0_i32 = arith.constant 0 : i32
    %c0_i32_0 = arith.constant 0 : i32
    return %arg0, %c0_i32 : i32, i32
  }
  func.func @transform_3(%arg0: i32) -> (i32, i32, i32) {
    %c0_i32 = arith.constant 0 : i32
    %c0_i32_0 = arith.constant 0 : i32
    %c0_i32_1 = arith.constant 0 : i32
    return %arg0, %c0_i32, %c0_i32_0 : i32, i32, i32
  }
}

</mosaic_0001>

<llo_original>
// kernel: tpu_custom_call.1
$region0: #{tpu_custom_call.1}
  #allocation0 [shape = 'u32[]', space=smem, size = 0x4, offset = 0x4, fixed_abs, tag = 'smem constant byte address 0x4 - core index']
  #allocation1 [shape = 'u32[144,128]{1,0:T(1,128)}', space=vmem, size = 0x12000, scoped, tag = 'internal scratch']
  %s0 = inlined_call_operand.hbm [shape: f32[3,32,128], index: 0, kind: input, shape index: {}]
  %s1 = inlined_call_operand.hbm [shape: s8[8,32,128], index: 1, kind: input, shape index: {}]
  %s2 = inlined_call_operand.hbm [shape: f32[32,128], index: 2, kind: input, shape index: {}]
  %s3 = inlined_call_operand.hbm [shape: f32[1,8,128], index: 3, kind: output, shape index: {}]
  %s4 = sld [smem:[#allocation0]]
  $region34: #{tpu_custom_call.1} parent=0
    _
  %s6 = ssub.s32 1, %s4
  %s7 = scalar_select 0, %s6, %s4
  $region1: #{tpu_custom_call.1} parent=0
    #allocation2 [shape = 'u8[49152]{0}', space=vmem, size = 0xc000, scoped, tag = 'input window, operand 0, single buffered']
    #allocation3 [shape = 's32[1]{0}', space=sflag, size = 0x4, scoped, tag = 'scoped memory for tpu_custom_call.1']
    #allocation4 [shape = 's32[1]{0}', space=sflag, size = 0x4, scoped, tag = 'scoped memory for tpu_custom_call.1']
    #allocation5 [shape = 'u8[32768]{0}', space=vmem, size = 0x8000, scoped, tag = 'input window, operand 1, single buffered']
    #allocation6 [shape = 's32[1]{0}', space=sflag, size = 0x4, scoped, tag = 'scoped memory for tpu_custom_call.1']
    #allocation7 [shape = 'u8[16384]{0}', space=vmem, size = 0x4000, scoped, tag = 'input window, operand 2, single buffered']
    #allocation8 [shape = 'u8[4096]{0}', space=vmem, size = 0x1000, scoped, tag = 'output window, operand 0, single buffered']
    %8 = vsyncpa [#allocation3], 0
    %9 = vsyncpa [#allocation6], 0
    %10 = vsyncpa [#allocation4], 0
    // Predicated region
    $region2: #{tpu_custom_call.1} parent=1 // pred_check
      _
    $region3: #{tpu_custom_call.1} parent=1 // pred_check_branch
      %12 = sbr.rel (0) target = $region5
    $region4: #{tpu_custom_call.1} parent=1 // pred_region
      %s14 = ssub.s32 1536, 1536
      %15 = vsyncadd [#allocation3], %s14
      %s16 = sshll.u32 [#allocation2], 4
      %s17 = int_to_ptr.vmem [resolvable:$true] %s16
      %22 = dma.hbm_to_vmem [thread:$0]  %s0, 1536, %s17, [#allocation3], 128, 128, 8
    $region5: #{tpu_custom_call.1} parent=1 // pred_fallthru
      _
    // Predicated region
    $region6: #{tpu_custom_call.1} parent=1 // pred_check
      _
    $region7: #{tpu_custom_call.1} parent=1 // pred_check_branch
      %24 = sbr.rel (0) target = $region9
    $region8: #{tpu_custom_call.1} parent=1 // pred_region
      %s26 = ssub.s32 1024, 1024
      %27 = vsyncadd [#allocation6], %s26
      %s28 = sshll.u32 [#allocation5], 4
      %s29 = int_to_ptr.vmem [resolvable:$true] %s28
      %34 = dma.hbm_to_vmem [thread:$0]  %s1, 1024, %s29, [#allocation6], 128, 128, 8
    $region9: #{tpu_custom_call.1} parent=1 // pred_fallthru
      _
    // Predicated region
    $region10: #{tpu_custom_call.1} parent=1 // pred_check
      _
    $region11: #{tpu_custom_call.1} parent=1 // pred_check_branch
      %36 = sbr.rel (0) target = $region13
    $region12: #{tpu_custom_call.1} parent=1 // pred_region
      %s38 = ssub.s32 512, 512
      %39 = vsyncadd [#allocation6], %s38
      %s40 = sshll.u32 [#allocation7], 4
      %s41 = int_to_ptr.vmem [resolvable:$true] %s40
      %46 = dma.hbm_to_vmem [thread:$0]  %s2, 512, %s41, [#allocation6], 128, 128, 8
    $region13: #{tpu_custom_call.1} parent=1 // pred_fallthru
      _
    // Predicated region
    $region14: #{tpu_custom_call.1} parent=1 // pred_check
      _
    $region15: #{tpu_custom_call.1} parent=1 // pred_check_branch
      %48 = sbr.rel (0) target = $region17
    $region16: #{tpu_custom_call.1} parent=1 // pred_region
      %49 = dma.done [#allocation3], 1536
    $region17: #{tpu_custom_call.1} parent=1 // pred_fallthru
      _
    // Predicated region
    $region18: #{tpu_custom_call.1} parent=1 // pred_check
      _
    $region19: #{tpu_custom_call.1} parent=1 // pred_check_branch
      %51 = sbr.rel (0) target = $region21
    $region20: #{tpu_custom_call.1} parent=1 // pred_region
      %52 = dma.done [#allocation6], 1024
    $region21: #{tpu_custom_call.1} parent=1 // pred_fallthru
      _
    // Predicated region
    $region22: #{tpu_custom_call.1} parent=1 // pred_check
      _
    $region23: #{tpu_custom_call.1} parent=1 // pred_check_branch
      %54 = sbr.rel (0) target = $region25
    $region24: #{tpu_custom_call.1} parent=1 // pred_region
      %55 = dma.done [#allocation6], 512
    $region25: #{tpu_custom_call.1} parent=1 // pred_fallthru
      _
    %s56 = scalar_lea.vmem [#allocation2], 64
    %v57 = vld [vmem:[%s56] sm:$0xff]
    %v58 = vld [vmem:[%s56 + $0x8] sm:$0xff]
    %v59 = vld [vmem:[%s56 + $0x10] sm:$0xff]
    %v60 = vld [vmem:[%s56 + $0x18] sm:$0xff]
    %v61 = vrcp.pop %v57
    %v62 = vrcp.pop %v58
    %v63 = vrcp.pop %v59
    %v64 = vrcp.pop %v60
    %v65 = vld [vmem:[#allocation2] sm:$0xff]
    %v66 = vld [vmem:[#allocation2 + $0x8] sm:$0xff]
    %v67 = vld [vmem:[#allocation2 + $0x10] sm:$0xff]
    %v68 = vld [vmem:[#allocation2 + $0x18] sm:$0xff]
    %v69 = vmul.f32 %v65, %v61
    %v70 = vmul.f32 %v66, %v62
    %v71 = vmul.f32 %v67, %v63
    %v72 = vmul.f32 %v68, %v64
    %s73 = scalar_lea.vmem [#allocation2], 32
    %v74 = vld [vmem:[%s73] sm:$0xff]
    %v75 = vld [vmem:[%s73 + $0x8] sm:$0xff]
    %v76 = vld [vmem:[%s73 + $0x10] sm:$0xff]
    %v77 = vld [vmem:[%s73 + $0x18] sm:$0xff]
    %v78 = vmul.f32 %v74, %v61
    %v79 = vmul.f32 %v75, %v62
    %v80 = vmul.f32 %v76, %v63
    %v81 = vmul.f32 %v77, %v64
    %v82 = vld [vmem:[#allocation7] sm:$0xff]
    %v83 = vld [vmem:[#allocation7 + $0x8] sm:$0xff]
    %v84 = vld [vmem:[#allocation7 + $0x10] sm:$0xff]
    %v85 = vld [vmem:[#allocation7 + $0x18] sm:$0xff]
    %v86 = vld [vmem:[#allocation5] sm:$0xff]
    %v87 = vunpack.c.0.s8 %v86
    %v88 = vunpack.c.1.s8 %v86
    %v89 = vunpack.c.2.s8 %v86
    %v90 = vunpack.c.3.s8 %v86
    %v91 = vcvt.s32.f32 %v87
    %v92 = vcvt.s32.f32 %v88
    %v93 = vcvt.s32.f32 %v89
    %v94 = vcvt.s32.f32 %v90
    %v95 = vmul.f32 %v91, %v69
    %v96 = vmul.f32 %v92, %v70
    %v97 = vmul.f32 %v93, %v71
    %v98 = vmul.f32 %v94, %v72
    %99 = vadd.xlane.f32.xlu0 %v95
    %v100 = vpop.xlane.xlu0 %99
    %101 = vadd.xlane.f32.xlu0 %v96
    %v102 = vpop.xlane.xlu0 %101
    %103 = vadd.xlane.f32.xlu0 %v97
    %v104 = vpop.xlane.xlu0 %103
    %105 = vadd.xlane.f32.xlu0 %v98
    %v106 = vpop.xlane.xlu0 %105
    %v107 = vmul.f32 %v91, %v78
    %v108 = vmul.f32 %v92, %v79
    %v109 = vmul.f32 %v93, %v80
    %v110 = vmul.f32 %v94, %v81
    %111 = vadd.xlane.f32.xlu0 %v107
    %v112 = vpop.xlane.xlu0 %111
    %113 = vadd.xlane.f32.xlu0 %v108
    %v114 = vpop.xlane.xlu0 %113
    %115 = vadd.xlane.f32.xlu0 %v109
    %v116 = vpop.xlane.xlu0 %115
    %117 = vadd.xlane.f32.xlu0 %v110
    %v118 = vpop.xlane.xlu0 %117
    %v119 = vmul.f32 %v82, %v100
    %v120 = vmul.f32 %v83, %v102
    %v121 = vmul.f32 %v84, %v104
    %v122 = vmul.f32 %v85, %v106
    %127 = vrot.lane.b32.xlu0 %v82, 120
    %v128 = vpop.permute.xlu0 %127
    %129 = vrot.lane.b32.xlu0 %v83, 120
    %v130 = vpop.permute.xlu0 %129
    %131 = vrot.lane.b32.xlu0 %v84, 120
    %v132 = vpop.permute.xlu0 %131
    %133 = vrot.lane.b32.xlu0 %v85, 120
    %v134 = vpop.permute.xlu0 %133
    %v139 = vsub.f32 %v119, %v128
    %v140 = vsub.f32 %v120, %v130
    %v141 = vsub.f32 %v121, %v132
    %v142 = vsub.f32 %v122, %v134
    %v143 = vmul.f32 %v82, %v112
    %v144 = vmul.f32 %v83, %v114
    %v145 = vmul.f32 %v84, %v116
    %v146 = vmul.f32 %v85, %v118
    %147 = vrot.lane.b32.xlu0 %v82, 112
    %v148 = vpop.permute.xlu0 %147
    %149 = vrot.lane.b32.xlu0 %v83, 112
    %v150 = vpop.permute.xlu0 %149
    %151 = vrot.lane.b32.xlu0 %v84, 112
    %v152 = vpop.permute.xlu0 %151
    %153 = vrot.lane.b32.xlu0 %v85, 112
    %v154 = vpop.permute.xlu0 %153
    %v159 = vsub.f32 %v143, %v148
    %v160 = vsub.f32 %v144, %v150
    %v161 = vsub.f32 %v145, %v152
    %v162 = vsub.f32 %v146, %v154
    %v163 = vmul.f32 %v139, %v139
    %v164 = vmul.f32 %v140, %v140
    %v165 = vmul.f32 %v141, %v141
    %v166 = vmul.f32 %v142, %v142
    %v167 = vmul.f32 %v159, %v159
    %v168 = vmul.f32 %v160, %v160
    %v169 = vmul.f32 %v161, %v161
    %v170 = vmul.f32 %v162, %v162
    %v171 = vadd.f32 %v163, 22500.0
    %v172 = vadd.f32 %v164, 22500.0
    %v173 = vadd.f32 %v165, 22500.0
    %v174 = vadd.f32 %v166, 22500.0
    %v175 = vrcp.pop %v171
    %v176 = vmul.f32 %v163, %v175
    %v177 = vrcp.pop %v172
    %v178 = vmul.f32 %v164, %v177
    %v179 = vrcp.pop %v173
    %v180 = vmul.f32 %v165, %v179
    %v181 = vrcp.pop %v174
    %v182 = vmul.f32 %v166, %v181
    %v183 = vadd.f32 %v176, 0.0
    %v184 = vadd.f32 %v178, 0.0
    %v185 = vadd.f32 %v180, 0.0
    %v186 = vadd.f32 %v182, 0.0
    %v187 = vadd.f32 %v167, 22500.0
    %v188 = vadd.f32 %v168, 22500.0
    %v189 = vadd.f32 %v169, 22500.0
    %v190 = vadd.f32 %v170, 22500.0
    %v191 = vrcp.pop %v187
    %v192 = vmul.f32 %v167, %v191
    %v193 = vrcp.pop %v188
    %v194 = vmul.f32 %v168, %v193
    %v195 = vrcp.pop %v189
    %v196 = vmul.f32 %v169, %v195
    %v197 = vrcp.pop %v190
    %v198 = vmul.f32 %v170, %v197
    %v199 = vadd.f32 %v183, %v192
    %v200 = vadd.f32 %v184, %v194
    %v201 = vadd.f32 %v185, %v196
    %v202 = vadd.f32 %v186, %v198
    %s203 = scalar_lea.vmem [#allocation5], 8
    %v204 = vld [vmem:[%s203] sm:$0xff]
    %v205 = vunpack.c.0.s8 %v204
    %v206 = vunpack.c.1.s8 %v204
    %v207 = vunpack.c.2.s8 %v204
    %v208 = vunpack.c.3.s8 %v204
    %v209 = vcvt.s32.f32 %v205
    %v210 = vcvt.s32.f32 %v206
    %v211 = vcvt.s32.f32 %v207
    %v212 = vcvt.s32.f32 %v208
    %v213 = vmul.f32 %v209, %v69
    %v214 = vmul.f32 %v210, %v70
    %v215 = vmul.f32 %v211, %v71
    %v216 = vmul.f32 %v212, %v72
    %217 = vadd.xlane.f32.xlu0 %v213
    %v218 = vpop.xlane.xlu0 %217
    %219 = vadd.xlane.f32.xlu0 %v214
    %v220 = vpop.xlane.xlu0 %219
    %221 = vadd.xlane.f32.xlu0 %v215
    %v222 = vpop.xlane.xlu0 %221
    %223 = vadd.xlane.f32.xlu0 %v216
    %v224 = vpop.xlane.xlu0 %223
    %v225 = vmul.f32 %v209, %v78
    %v226 = vmul.f32 %v210, %v79
    %v227 = vmul.f32 %v211, %v80
    %v228 = vmul.f32 %v212, %v81
    %229 = vadd.xlane.f32.xlu0 %v225
    %v230 = vpop.xlane.xlu0 %229
    %231 = vadd.xlane.f32.xlu0 %v226
    %v232 = vpop.xlane.xlu0 %231
    %233 = vadd.xlane.f32.xlu0 %v227
    %v234 = vpop.xlane.xlu0 %233
    %235 = vadd.xlane.f32.xlu0 %v228
    %v236 = vpop.xlane.xlu0 %235
    %v237 = vmul.f32 %v82, %v218
    %v238 = vmul.f32 %v83, %v220
    %v239 = vmul.f32 %v84, %v222
    %v240 = vmul.f32 %v85, %v224
    %v241 = vsub.f32 %v237, %v128
    %v242 = vsub.f32 %v238, %v130
    %v243 = vsub.f32 %v239, %v132
    %v244 = vsub.f32 %v240, %v134
    %v245 = vmul.f32 %v82, %v230
    %v246 = vmul.f32 %v83, %v232
    %v247 = vmul.f32 %v84, %v234
    %v248 = vmul.f32 %v85, %v236
    %v249 = vsub.f32 %v245, %v148
    %v250 = vsub.f32 %v246, %v150
    %v251 = vsub.f32 %v247, %v152
    %v252 = vsub.f32 %v248, %v154
    %v253 = vmul.f32 %v241, %v241
    %v254 = vmul.f32 %v242, %v242
    %v255 = vmul.f32 %v243, %v243
    %v256 = vmul.f32 %v244, %v244
    %v257 = vmul.f32 %v249, %v249
    %v258 = vmul.f32 %v250, %v250
    %v259 = vmul.f32 %v251, %v251
    %v260 = vmul.f32 %v252, %v252
    %v261 = vadd.f32 %v253, 22500.0
    %v262 = vadd.f32 %v254, 22500.0
    %v263 = vadd.f32 %v255, 22500.0
    %v264 = vadd.f32 %v256, 22500.0
    %v265 = vrcp.pop %v261
    %v266 = vmul.f32 %v253, %v265
    %v267 = vrcp.pop %v262
    %v268 = vmul.f32 %v254, %v267
    %v269 = vrcp.pop %v263
    %v270 = vmul.f32 %v255, %v269
    %v271 = vrcp.pop %v264
    %v272 = vmul.f32 %v256, %v271
    %277 = vrot.lane.b32.xlu0 %v266, 127
    %v278 = vpop.permute.xlu0 %277
    %279 = vrot.lane.b32.xlu0 %v268, 127
    %v280 = vpop.permute.xlu0 %279
    %281 = vrot.lane.b32.xlu0 %v270, 127
    %v282 = vpop.permute.xlu0 %281
    %283 = vrot.lane.b32.xlu0 %v272, 127
    %v284 = vpop.permute.xlu0 %283
    %v289 = vadd.f32 %v199, %v278
    %v290 = vadd.f32 %v200, %v280
    %v291 = vadd.f32 %v201, %v282
    %v292 = vadd.f32 %v202, %v284
    %v293 = vadd.f32 %v257, 22500.0
    %v294 = vadd.f32 %v258, 22500.0
    %v295 = vadd.f32 %v259, 22500.0
    %v296 = vadd.f32 %v260, 22500.0
    %v297 = vrcp.pop %v293
    %v298 = vmul.f32 %v257, %v297
    %v299 = vrcp.pop %v294
    %v300 = vmul.f32 %v258, %v299
    %v301 = vrcp.pop %v295
    %v302 = vmul.f32 %v259, %v301
    %v303 = vrcp.pop %v296
    %v304 = vmul.f32 %v260, %v303
    %309 = vrot.lane.b32.xlu0 %v298, 127
    %v310 = vpop.permute.xlu0 %309
    %311 = vrot.lane.b32.xlu0 %v300, 127
    %v312 = vpop.permute.xlu0 %311
    %313 = vrot.lane.b32.xlu0 %v302, 127
    %v314 = vpop.permute.xlu0 %313
    %315 = vrot.lane.b32.xlu0 %v304, 127
    %v316 = vpop.permute.xlu0 %315
    %v321 = vadd.f32 %v289, %v310
    %v322 = vadd.f32 %v290, %v312
    %v323 = vadd.f32 %v291, %v314
    %v324 = vadd.f32 %v292, %v316
    %s325 = scalar_lea.vmem [#allocation5], 16
    %v326 = vld [vmem:[%s325] sm:$0xff]
    %v327 = vunpack.c.0.s8 %v326
    %v328 = vunpack.c.1.s8 %v326
    %v329 = vunpack.c.2.s8 %v326
    %v330 = vunpack.c.3.s8 %v326
    %v331 = vcvt.s32.f32 %v327
    %v332 = vcvt.s32.f32 %v328
    %v333 = vcvt.s32.f32 %v329
    %v334 = vcvt.s32.f32 %v330
    %v335 = vmul.f32 %v331, %v69
    %v336 = vmul.f32 %v332, %v70
    %v337 = vmul.f32 %v333, %v71
    %v338 = vmul.f32 %v334, %v72
    %339 = vadd.xlane.f32.xlu0 %v335
    %v340 = vpop.xlane.xlu0 %339
    %341 = vadd.xlane.f32.xlu0 %v336
    %v342 = vpop.xlane.xlu0 %341
    %343 = vadd.xlane.f32.xlu0 %v337
    %v344 = vpop.xlane.xlu0 %343
    %345 = vadd.xlane.f32.xlu0 %v338
    %v346 = vpop.xlane.xlu0 %345
    %v347 = vmul.f32 %v331, %v78
    %v348 = vmul.f32 %v332, %v79
    %v349 = vmul.f32 %v333, %v80
    %v350 = vmul.f32 %v334, %v81
    %351 = vadd.xlane.f32.xlu0 %v347
    %v352 = vpop.xlane.xlu0 %351
    %353 = vadd.xlane.f32.xlu0 %v348
    %v354 = vpop.xlane.xlu0 %353
    %355 = vadd.xlane.f32.xlu0 %v349
    %v356 = vpop.xlane.xlu0 %355
    %357 = vadd.xlane.f32.xlu0 %v350
    %v358 = vpop.xlane.xlu0 %357
    %v359 = vmul.f32 %v82, %v340
    %v360 = vmul.f32 %v83, %v342
    %v361 = vmul.f32 %v84, %v344
    %v362 = vmul.f32 %v85, %v346
    %v363 = vsub.f32 %v359, %v128
    %v364 = vsub.f32 %v360, %v130
    %v365 = vsub.f32 %v361, %v132
    %v366 = vsub.f32 %v362, %v134
    %v367 = vmul.f32 %v82, %v352
    %v368 = vmul.f32 %v83, %v354
    %v369 = vmul.f32 %v84, %v356
    %v370 = vmul.f32 %v85, %v358
    %v371 = vsub.f32 %v367, %v148
    %v372 = vsub.f32 %v368, %v150
    %v373 = vsub.f32 %v369, %v152
    %v374 = vsub.f32 %v370, %v154
    %v375 = vmul.f32 %v363, %v363
    %v376 = vmul.f32 %v364, %v364
    %v377 = vmul.f32 %v365, %v365
    %v378 = vmul.f32 %v366, %v366
    %v379 = vmul.f32 %v371, %v371
    %v380 = vmul.f32 %v372, %v372
    %v381 = vmul.f32 %v373, %v373
    %v382 = vmul.f32 %v374, %v374
    %v383 = vadd.f32 %v375, 22500.0
    %v384 = vadd.f32 %v376, 22500.0
    %v385 = vadd.f32 %v377, 22500.0
    %v386 = vadd.f32 %v378, 22500.0
    %v387 = vrcp.pop %v383
    %v388 = vmul.f32 %v375, %v387
    %v389 = vrcp.pop %v384
    %v390 = vmul.f32 %v376, %v389
    %v391 = vrcp.pop %v385
    %v392 = vmul.f32 %v377, %v391
    %v393 = vrcp.pop %v386
    %v394 = vmul.f32 %v378, %v393
    %399 = vrot.lane.b32.xlu0 %v388, 126
    %v400 = vpop.permute.xlu0 %399
    %401 = vrot.lane.b32.xlu0 %v390, 126
    %v402 = vpop.permute.xlu0 %401
    %403 = vrot.lane.b32.xlu0 %v392, 126
    %v404 = vpop.permute.xlu0 %403
    %405 = vrot.lane.b32.xlu0 %v394, 126
    %v406 = vpop.permute.xlu0 %405
    %v411 = vadd.f32 %v321, %v400
    %v412 = vadd.f32 %v322, %v402
    %v413 = vadd.f32 %v323, %v404
    %v414 = vadd.f32 %v324, %v406
    %v415 = vadd.f32 %v379, 22500.0
    %v416 = vadd.f32 %v380, 22500.0
    %v417 = vadd.f32 %v381, 22500.0
    %v418 = vadd.f32 %v382, 22500.0
    %v419 = vrcp.pop %v415
    %v420 = vmul.f32 %v379, %v419
    %v421 = vrcp.pop %v416
    %v422 = vmul.f32 %v380, %v421
    %v423 = vrcp.pop %v417
    %v424 = vmul.f32 %v381, %v423
    %v425 = vrcp.pop %v418
    %v426 = vmul.f32 %v382, %v425
    %431 = vrot.lane.b32.xlu0 %v420, 126
    %v432 = vpop.permute.xlu0 %431
    %433 = vrot.lane.b32.xlu0 %v422, 126
    %v434 = vpop.permute.xlu0 %433
    %435 = vrot.lane.b32.xlu0 %v424, 126
    %v436 = vpop.permute.xlu0 %435
    %437 = vrot.lane.b32.xlu0 %v426, 126
    %v438 = vpop.permute.xlu0 %437
    %v443 = vadd.f32 %v411, %v432
    %v444 = vadd.f32 %v412, %v434
    %v445 = vadd.f32 %v413, %v436
    %v446 = vadd.f32 %v414, %v438
    %s447 = scalar_lea.vmem [#allocation5], 24
    %v448 = vld [vmem:[%s447] sm:$0xff]
    %v449 = vunpack.c.0.s8 %v448
    %v450 = vunpack.c.1.s8 %v448
    %v451 = vunpack.c.2.s8 %v448
    %v452 = vunpack.c.3.s8 %v448
    %v453 = vcvt.s32.f32 %v449
    %v454 = vcvt.s32.f32 %v450
    %v455 = vcvt.s32.f32 %v451
    %v456 = vcvt.s32.f32 %v452
    %v457 = vmul.f32 %v453, %v69
    %v458 = vmul.f32 %v454, %v70
    %v459 = vmul.f32 %v455, %v71
    %v460 = vmul.f32 %v456, %v72
    %461 = vadd.xlane.f32.xlu0 %v457
    %v462 = vpop.xlane.xlu0 %461
    %463 = vadd.xlane.f32.xlu0 %v458
    %v464 = vpop.xlane.xlu0 %463
    %465 = vadd.xlane.f32.xlu0 %v459
    %v466 = vpop.xlane.xlu0 %465
    %467 = vadd.xlane.f32.xlu0 %v460
    %v468 = vpop.xlane.xlu0 %467
    %v469 = vmul.f32 %v453, %v78
    %v470 = vmul.f32 %v454, %v79
    %v471 = vmul.f32 %v455, %v80
    %v472 = vmul.f32 %v456, %v81
    %473 = vadd.xlane.f32.xlu0 %v469
    %v474 = vpop.xlane.xlu0 %473
    %475 = vadd.xlane.f32.xlu0 %v470
    %v476 = vpop.xlane.xlu0 %475
    %477 = vadd.xlane.f32.xlu0 %v471
    %v478 = vpop.xlane.xlu0 %477
    %479 = vadd.xlane.f32.xlu0 %v472
    %v480 = vpop.xlane.xlu0 %479
    %v481 = vmul.f32 %v82, %v462
    %v482 = vmul.f32 %v83, %v464
    %v483 = vmul.f32 %v84, %v466
    %v484 = vmul.f32 %v85, %v468
    %v485 = vsub.f32 %v481, %v128
    %v486 = vsub.f32 %v482, %v130
    %v487 = vsub.f32 %v483, %v132
    %v488 = vsub.f32 %v484, %v134
    %v489 = vmul.f32 %v82, %v474
    %v490 = vmul.f32 %v83, %v476
    %v491 = vmul.f32 %v84, %v478
    %v492 = vmul.f32 %v85, %v480
    %v493 = vsub.f32 %v489, %v148
    %v494 = vsub.f32 %v490, %v150
    %v495 = vsub.f32 %v491, %v152
    %v496 = vsub.f32 %v492, %v154
    %v497 = vmul.f32 %v485, %v485
    %v498 = vmul.f32 %v486, %v486
    %v499 = vmul.f32 %v487, %v487
    %v500 = vmul.f32 %v488, %v488
    %v501 = vmul.f32 %v493, %v493
    %v502 = vmul.f32 %v494, %v494
    %v503 = vmul.f32 %v495, %v495
    %v504 = vmul.f32 %v496, %v496
    %v505 = vadd.f32 %v497, 22500.0
    %v506 = vadd.f32 %v498, 22500.0
    %v507 = vadd.f32 %v499, 22500.0
    %v508 = vadd.f32 %v500, 22500.0
    %v509 = vrcp.pop %v505
    %v510 = vmul.f32 %v497, %v509
    %v511 = vrcp.pop %v506
    %v512 = vmul.f32 %v498, %v511
    %v513 = vrcp.pop %v507
    %v514 = vmul.f32 %v499, %v513
    %v515 = vrcp.pop %v508
    %v516 = vmul.f32 %v500, %v515
    %521 = vrot.lane.b32.xlu0 %v510, 125
    %v522 = vpop.permute.xlu0 %521
    %523 = vrot.lane.b32.xlu0 %v512, 125
    %v524 = vpop.permute.xlu0 %523
    %525 = vrot.lane.b32.xlu0 %v514, 125
    %v526 = vpop.permute.xlu0 %525
    %527 = vrot.lane.b32.xlu0 %v516, 125
    %v528 = vpop.permute.xlu0 %527
    %v533 = vadd.f32 %v443, %v522
    %v534 = vadd.f32 %v444, %v524
    %v535 = vadd.f32 %v445, %v526
    %v536 = vadd.f32 %v446, %v528
    %v537 = vadd.f32 %v501, 22500.0
    %v538 = vadd.f32 %v502, 22500.0
    %v539 = vadd.f32 %v503, 22500.0
    %v540 = vadd.f32 %v504, 22500.0
    %v541 = vrcp.pop %v537
    %v542 = vmul.f32 %v501, %v541
    %v543 = vrcp.pop %v538
    %v544 = vmul.f32 %v502, %v543
    %v545 = vrcp.pop %v539
    %v546 = vmul.f32 %v503, %v545
    %v547 = vrcp.pop %v540
    %v548 = vmul.f32 %v504, %v547
    %553 = vrot.lane.b32.xlu0 %v542, 125
    %v554 = vpop.permute.xlu0 %553
    %555 = vrot.lane.b32.xlu0 %v544, 125
    %v556 = vpop.permute.xlu0 %555
    %557 = vrot.lane.b32.xlu0 %v546, 125
    %v558 = vpop.permute.xlu0 %557
    %559 = vrot.lane.b32.xlu0 %v548, 125
    %v560 = vpop.permute.xlu0 %559
    %v565 = vadd.f32 %v533, %v554
    %v566 = vadd.f32 %v534, %v556
    %v567 = vadd.f32 %v535, %v558
    %v568 = vadd.f32 %v536, %v560
    %s569 = scalar_lea.vmem [#allocation5], 32
    %v570 = vld [vmem:[%s569] sm:$0xff]
    %v571 = vunpack.c.0.s8 %v570
    %v572 = vunpack.c.1.s8 %v570
    %v573 = vunpack.c.2.s8 %v570
    %v574 = vunpack.c.3.s8 %v570
    %v575 = vcvt.s32.f32 %v571
    %v576 = vcvt.s32.f32 %v572
    %v577 = vcvt.s32.f32 %v573
    %v578 = vcvt.s32.f32 %v574
    %v579 = vmul.f32 %v575, %v69
    %v580 = vmul.f32 %v576, %v70
    %v581 = vmul.f32 %v577, %v71
    %v582 = vmul.f32 %v578, %v72
    %583 = vadd.xlane.f32.xlu0 %v579
    %v584 = vpop.xlane.xlu0 %583
    %585 = vadd.xlane.f32.xlu0 %v580
    %v586 = vpop.xlane.xlu0 %585
    %587 = vadd.xlane.f32.xlu0 %v581
    %v588 = vpop.xlane.xlu0 %587
    %589 = vadd.xlane.f32.xlu0 %v582
    %v590 = vpop.xlane.xlu0 %589
    %v591 = vmul.f32 %v575, %v78
    %v592 = vmul.f32 %v576, %v79
    %v593 = vmul.f32 %v577, %v80
    %v594 = vmul.f32 %v578, %v81
    %595 = vadd.xlane.f32.xlu0 %v591
    %v596 = vpop.xlane.xlu0 %595
    %597 = vadd.xlane.f32.xlu0 %v592
    %v598 = vpop.xlane.xlu0 %597
    %599 = vadd.xlane.f32.xlu0 %v593
    %v600 = vpop.xlane.xlu0 %599
    %601 = vadd.xlane.f32.xlu0 %v594
    %v602 = vpop.xlane.xlu0 %601
    %v603 = vmul.f32 %v82, %v584
    %v604 = vmul.f32 %v83, %v586
    %v605 = vmul.f32 %v84, %v588
    %v606 = vmul.f32 %v85, %v590
    %v607 = vsub.f32 %v603, %v128
    %v608 = vsub.f32 %v604, %v130
    %v609 = vsub.f32 %v605, %v132
    %v610 = vsub.f32 %v606, %v134
    %v611 = vmul.f32 %v82, %v596
    %v612 = vmul.f32 %v83, %v598
    %v613 = vmul.f32 %v84, %v600
    %v614 = vmul.f32 %v85, %v602
    %v615 = vsub.f32 %v611, %v148
    %v616 = vsub.f32 %v612, %v150
    %v617 = vsub.f32 %v613, %v152
    %v618 = vsub.f32 %v614, %v154
    %v619 = vmul.f32 %v607, %v607
    %v620 = vmul.f32 %v608, %v608
    %v621 = vmul.f32 %v609, %v609
    %v622 = vmul.f32 %v610, %v610
    %v623 = vmul.f32 %v615, %v615
    %v624 = vmul.f32 %v616, %v616
    %v625 = vmul.f32 %v617, %v617
    %v626 = vmul.f32 %v618, %v618
    %v627 = vadd.f32 %v619, 22500.0
    %v628 = vadd.f32 %v620, 22500.0
    %v629 = vadd.f32 %v621, 22500.0
    %v630 = vadd.f32 %v622, 22500.0
    %v631 = vrcp.pop %v627
    %v632 = vmul.f32 %v619, %v631
    %v633 = vrcp.pop %v628
    %v634 = vmul.f32 %v620, %v633
    %v635 = vrcp.pop %v629
    %v636 = vmul.f32 %v621, %v635
    %v637 = vrcp.pop %v630
    %v638 = vmul.f32 %v622, %v637
    %643 = vrot.lane.b32.xlu0 %v632, 124
    %v644 = vpop.permute.xlu0 %643
    %645 = vrot.lane.b32.xlu0 %v634, 124
    %v646 = vpop.permute.xlu0 %645
    %647 = vrot.lane.b32.xlu0 %v636, 124
    %v648 = vpop.permute.xlu0 %647
    %649 = vrot.lane.b32.xlu0 %v638, 124
    %v650 = vpop.permute.xlu0 %649
    %v655 = vadd.f32 %v565, %v644
    %v656 = vadd.f32 %v566, %v646
    %v657 = vadd.f32 %v567, %v648
    %v658 = vadd.f32 %v568, %v650
    %v659 = vadd.f32 %v623, 22500.0
    %v660 = vadd.f32 %v624, 22500.0
    %v661 = vadd.f32 %v625, 22500.0
    %v662 = vadd.f32 %v626, 22500.0
    %v663 = vrcp.pop %v659
    %v664 = vmul.f32 %v623, %v663
    %v665 = vrcp.pop %v660
    %v666 = vmul.f32 %v624, %v665
    %v667 = vrcp.pop %v661
    %v668 = vmul.f32 %v625, %v667
    %v669 = vrcp.pop %v662
    %v670 = vmul.f32 %v626, %v669
    %675 = vrot.lane.b32.xlu0 %v664, 124
    %v676 = vpop.permute.xlu0 %675
    %677 = vrot.lane.b32.xlu0 %v666, 124
    %v678 = vpop.permute.xlu0 %677
    %679 = vrot.lane.b32.xlu0 %v668, 124
    %v680 = vpop.permute.xlu0 %679
    %681 = vrot.lane.b32.xlu0 %v670, 124
    %v682 = vpop.permute.xlu0 %681
    %v687 = vadd.f32 %v655, %v676
    %v688 = vadd.f32 %v656, %v678
    %v689 = vadd.f32 %v657, %v680
    %v690 = vadd.f32 %v658, %v682
    %s691 = scalar_lea.vmem [#allocation5], 40
    %v692 = vld [vmem:[%s691] sm:$0xff]
    %v693 = vunpack.c.0.s8 %v692
    %v694 = vunpack.c.1.s8 %v692
    %v695 = vunpack.c.2.s8 %v692
    %v696 = vunpack.c.3.s8 %v692
    %v697 = vcvt.s32.f32 %v693
    %v698 = vcvt.s32.f32 %v694
    %v699 = vcvt.s32.f32 %v695
    %v700 = vcvt.s32.f32 %v696
    %v701 = vmul.f32 %v697, %v69
    %v702 = vmul.f32 %v698, %v70
    %v703 = vmul.f32 %v699, %v71
    %v704 = vmul.f32 %v700, %v72
    %705 = vadd.xlane.f32.xlu0 %v701
    %v706 = vpop.xlane.xlu0 %705
    %707 = vadd.xlane.f32.xlu0 %v702
    %v708 = vpop.xlane.xlu0 %707
    %709 = vadd.xlane.f32.xlu0 %v703
    %v710 = vpop.xlane.xlu0 %709
    %711 = vadd.xlane.f32.xlu0 %v704
    %v712 = vpop.xlane.xlu0 %711
    %v713 = vmul.f32 %v697, %v78
    %v714 = vmul.f32 %v698, %v79
    %v715 = vmul.f32 %v699, %v80
    %v716 = vmul.f32 %v700, %v81
    %717 = vadd.xlane.f32.xlu0 %v713
    %v718 = vpop.xlane.xlu0 %717
    %719 = vadd.xlane.f32.xlu0 %v714
    %v720 = vpop.xlane.xlu0 %719
    %721 = vadd.xlane.f32.xlu0 %v715
    %v722 = vpop.xlane.xlu0 %721
    %723 = vadd.xlane.f32.xlu0 %v716
    %v724 = vpop.xlane.xlu0 %723
    %v725 = vmul.f32 %v82, %v706
    %v726 = vmul.f32 %v83, %v708
    %v727 = vmul.f32 %v84, %v710
    %v728 = vmul.f32 %v85, %v712
    %v729 = vsub.f32 %v725, %v128
    %v730 = vsub.f32 %v726, %v130
    %v731 = vsub.f32 %v727, %v132
    %v732 = vsub.f32 %v728, %v134
    %v733 = vmul.f32 %v82, %v718
    %v734 = vmul.f32 %v83, %v720
    %v735 = vmul.f32 %v84, %v722
    %v736 = vmul.f32 %v85, %v724
    %v737 = vsub.f32 %v733, %v148
    %v738 = vsub.f32 %v734, %v150
    %v739 = vsub.f32 %v735, %v152
    %v740 = vsub.f32 %v736, %v154
    %v741 = vmul.f32 %v729, %v729
    %v742 = vmul.f32 %v730, %v730
    %v743 = vmul.f32 %v731, %v731
    %v744 = vmul.f32 %v732, %v732
    %v745 = vmul.f32 %v737, %v737
    %v746 = vmul.f32 %v738, %v738
    %v747 = vmul.f32 %v739, %v739
    %v748 = vmul.f32 %v740, %v740
    %v749 = vadd.f32 %v741, 22500.0
    %v750 = vadd.f32 %v742, 22500.0
    %v751 = vadd.f32 %v743, 22500.0
    %v752 = vadd.f32 %v744, 22500.0
    %v753 = vrcp.pop %v749
    %v754 = vmul.f32 %v741, %v753
    %v755 = vrcp.pop %v750
    %v756 = vmul.f32 %v742, %v755
    %v757 = vrcp.pop %v751
    %v758 = vmul.f32 %v743, %v757
    %v759 = vrcp.pop %v752
    %v760 = vmul.f32 %v744, %v759
    %765 = vrot.lane.b32.xlu0 %v754, 123
    %v766 = vpop.permute.xlu0 %765
    %767 = vrot.lane.b32.xlu0 %v756, 123
    %v768 = vpop.permute.xlu0 %767
    %769 = vrot.lane.b32.xlu0 %v758, 123
    %v770 = vpop.permute.xlu0 %769
    %771 = vrot.lane.b32.xlu0 %v760, 123
    %v772 = vpop.permute.xlu0 %771
    %v777 = vadd.f32 %v687, %v766
    %v778 = vadd.f32 %v688, %v768
    %v779 = vadd.f32 %v689, %v770
    %v780 = vadd.f32 %v690, %v772
    %v781 = vadd.f32 %v745, 22500.0
    %v782 = vadd.f32 %v746, 22500.0
    %v783 = vadd.f32 %v747, 22500.0
    %v784 = vadd.f32 %v748, 22500.0
    %v785 = vrcp.pop %v781
    %v786 = vmul.f32 %v745, %v785
    %v787 = vrcp.pop %v782
    %v788 = vmul.f32 %v746, %v787
    %v789 = vrcp.pop %v783
    %v790 = vmul.f32 %v747, %v789
    %v791 = vrcp.pop %v784
    %v792 = vmul.f32 %v748, %v791
    %797 = vrot.lane.b32.xlu0 %v786, 123
    %v798 = vpop.permute.xlu0 %797
    %799 = vrot.lane.b32.xlu0 %v788, 123
    %v800 = vpop.permute.xlu0 %799
    %801 = vrot.lane.b32.xlu0 %v790, 123
    %v802 = vpop.permute.xlu0 %801
    %803 = vrot.lane.b32.xlu0 %v792, 123
    %v804 = vpop.permute.xlu0 %803
    %v809 = vadd.f32 %v777, %v798
    %v810 = vadd.f32 %v778, %v800
    %v811 = vadd.f32 %v779, %v802
    %v812 = vadd.f32 %v780, %v804
    %s813 = scalar_lea.vmem [#allocation5], 48
    %v814 = vld [vmem:[%s813] sm:$0xff]
    %v815 = vunpack.c.0.s8 %v814
    %v816 = vunpack.c.1.s8 %v814
    %v817 = vunpack.c.2.s8 %v814
    %v818 = vunpack.c.3.s8 %v814
    %v819 = vcvt.s32.f32 %v815
    %v820 = vcvt.s32.f32 %v816
    %v821 = vcvt.s32.f32 %v817
    %v822 = vcvt.s32.f32 %v818
    %v823 = vmul.f32 %v819, %v69
    %v824 = vmul.f32 %v820, %v70
    %v825 = vmul.f32 %v821, %v71
    %v826 = vmul.f32 %v822, %v72
    %827 = vadd.xlane.f32.xlu0 %v823
    %v828 = vpop.xlane.xlu0 %827
    %829 = vadd.xlane.f32.xlu0 %v824
    %v830 = vpop.xlane.xlu0 %829
    %831 = vadd.xlane.f32.xlu0 %v825
    %v832 = vpop.xlane.xlu0 %831
    %833 = vadd.xlane.f32.xlu0 %v826
    %v834 = vpop.xlane.xlu0 %833
    %v835 = vmul.f32 %v819, %v78
    %v836 = vmul.f32 %v820, %v79
    %v837 = vmul.f32 %v821, %v80
    %v838 = vmul.f32 %v822, %v81
    %839 = vadd.xlane.f32.xlu0 %v835
    %v840 = vpop.xlane.xlu0 %839
    %841 = vadd.xlane.f32.xlu0 %v836
    %v842 = vpop.xlane.xlu0 %841
    %843 = vadd.xlane.f32.xlu0 %v837
    %v844 = vpop.xlane.xlu0 %843
    %845 = vadd.xlane.f32.xlu0 %v838
    %v846 = vpop.xlane.xlu0 %845
    %v847 = vmul.f32 %v82, %v828
    %v848 = vmul.f32 %v83, %v830
    %v849 = vmul.f32 %v84, %v832
    %v850 = vmul.f32 %v85, %v834
    %v851 = vsub.f32 %v847, %v128
    %v852 = vsub.f32 %v848, %v130
    %v853 = vsub.f32 %v849, %v132
    %v854 = vsub.f32 %v850, %v134
    %v855 = vmul.f32 %v82, %v840
    %v856 = vmul.f32 %v83, %v842
    %v857 = vmul.f32 %v84, %v844
    %v858 = vmul.f32 %v85, %v846
    %v859 = vsub.f32 %v855, %v148
    %v860 = vsub.f32 %v856, %v150
    %v861 = vsub.f32 %v857, %v152
    %v862 = vsub.f32 %v858, %v154
    %v863 = vmul.f32 %v851, %v851
    %v864 = vmul.f32 %v852, %v852
    %v865 = vmul.f32 %v853, %v853
    %v866 = vmul.f32 %v854, %v854
    %v867 = vmul.f32 %v859, %v859
    %v868 = vmul.f32 %v860, %v860
    %v869 = vmul.f32 %v861, %v861
    %v870 = vmul.f32 %v862, %v862
    %v871 = vadd.f32 %v863, 22500.0
    %v872 = vadd.f32 %v864, 22500.0
    %v873 = vadd.f32 %v865, 22500.0
    %v874 = vadd.f32 %v866, 22500.0
    %v875 = vrcp.pop %v871
    %v876 = vmul.f32 %v863, %v875
    %v877 = vrcp.pop %v872
    %v878 = vmul.f32 %v864, %v877
    %v879 = vrcp.pop %v873
    %v880 = vmul.f32 %v865, %v879
    %v881 = vrcp.pop %v874
    %v882 = vmul.f32 %v866, %v881
    %887 = vrot.lane.b32.xlu0 %v876, 122
    %v888 = vpop.permute.xlu0 %887
    %889 = vrot.lane.b32.xlu0 %v878, 122
    %v890 = vpop.permute.xlu0 %889
    %891 = vrot.lane.b32.xlu0 %v880, 122
    %v892 = vpop.permute.xlu0 %891
    %893 = vrot.lane.b32.xlu0 %v882, 122
    %v894 = vpop.permute.xlu0 %893
    %v899 = vadd.f32 %v809, %v888
    %v900 = vadd.f32 %v810, %v890
    %v901 = vadd.f32 %v811, %v892
    %v902 = vadd.f32 %v812, %v894
    %v903 = vadd.f32 %v867, 22500.0
    %v904 = vadd.f32 %v868, 22500.0
    %v905 = vadd.f32 %v869, 22500.0
    %v906 = vadd.f32 %v870, 22500.0
    %v907 = vrcp.pop %v903
    %v908 = vmul.f32 %v867, %v907
    %v909 = vrcp.pop %v904
    %v910 = vmul.f32 %v868, %v909
    %v911 = vrcp.pop %v905
    %v912 = vmul.f32 %v869, %v911
    %v913 = vrcp.pop %v906
    %v914 = vmul.f32 %v870, %v913
    %919 = vrot.lane.b32.xlu0 %v908, 122
    %v920 = vpop.permute.xlu0 %919
    %921 = vrot.lane.b32.xlu0 %v910, 122
    %v922 = vpop.permute.xlu0 %921
    %923 = vrot.lane.b32.xlu0 %v912, 122
    %v924 = vpop.permute.xlu0 %923
    %925 = vrot.lane.b32.xlu0 %v914, 122
    %v926 = vpop.permute.xlu0 %925
    %v931 = vadd.f32 %v899, %v920
    %v932 = vadd.f32 %v900, %v922
    %v933 = vadd.f32 %v901, %v924
    %v934 = vadd.f32 %v902, %v926
    %s935 = scalar_lea.vmem [#allocation5], 56
    %v936 = vld [vmem:[%s935] sm:$0xff]
    %v937 = vunpack.c.0.s8 %v936
    %v938 = vunpack.c.1.s8 %v936
    %v939 = vunpack.c.2.s8 %v936
    %v940 = vunpack.c.3.s8 %v936
    %v941 = vcvt.s32.f32 %v937
    %v942 = vcvt.s32.f32 %v938
    %v943 = vcvt.s32.f32 %v939
    %v944 = vcvt.s32.f32 %v940
    %v945 = vmul.f32 %v941, %v69
    %v946 = vmul.f32 %v942, %v70
    %v947 = vmul.f32 %v943, %v71
    %v948 = vmul.f32 %v944, %v72
    %949 = vadd.xlane.f32.xlu0 %v945
    %v950 = vpop.xlane.xlu0 %949
    %951 = vadd.xlane.f32.xlu0 %v946
    %v952 = vpop.xlane.xlu0 %951
    %953 = vadd.xlane.f32.xlu0 %v947
    %v954 = vpop.xlane.xlu0 %953
    %955 = vadd.xlane.f32.xlu0 %v948
    %v956 = vpop.xlane.xlu0 %955
    %v957 = vmul.f32 %v941, %v78
    %v958 = vmul.f32 %v942, %v79
    %v959 = vmul.f32 %v943, %v80
    %v960 = vmul.f32 %v944, %v81
    %961 = vadd.xlane.f32.xlu0 %v957
    %v962 = vpop.xlane.xlu0 %961
    %963 = vadd.xlane.f32.xlu0 %v958
    %v964 = vpop.xlane.xlu0 %963
    %965 = vadd.xlane.f32.xlu0 %v959
    %v966 = vpop.xlane.xlu0 %965
    %967 = vadd.xlane.f32.xlu0 %v960
    %v968 = vpop.xlane.xlu0 %967
    %v969 = vmul.f32 %v82, %v950
    %v970 = vmul.f32 %v83, %v952
    %v971 = vmul.f32 %v84, %v954
    %v972 = vmul.f32 %v85, %v956
    %v973 = vsub.f32 %v969, %v128
    %v974 = vsub.f32 %v970, %v130
    %v975 = vsub.f32 %v971, %v132
    %v976 = vsub.f32 %v972, %v134
    %v977 = vmul.f32 %v82, %v962
    %v978 = vmul.f32 %v83, %v964
    %v979 = vmul.f32 %v84, %v966
    %v980 = vmul.f32 %v85, %v968
    %v981 = vsub.f32 %v977, %v148
    %v982 = vsub.f32 %v978, %v150
    %v983 = vsub.f32 %v979, %v152
    %v984 = vsub.f32 %v980, %v154
    %v985 = vmul.f32 %v973, %v973
    %v986 = vmul.f32 %v974, %v974
    %v987 = vmul.f32 %v975, %v975
    %v988 = vmul.f32 %v976, %v976
    %v989 = vmul.f32 %v981, %v981
    %v990 = vmul.f32 %v982, %v982
    %v991 = vmul.f32 %v983, %v983
    %v992 = vmul.f32 %v984, %v984
    %v993 = vadd.f32 %v985, 22500.0
    %v994 = vadd.f32 %v986, 22500.0
    %v995 = vadd.f32 %v987, 22500.0
    %v996 = vadd.f32 %v988, 22500.0
    %v997 = vrcp.pop %v993
    %v998 = vmul.f32 %v985, %v997
    %v999 = vrcp.pop %v994
    %v1000 = vmul.f32 %v986, %v999
    %v1001 = vrcp.pop %v995
    %v1002 = vmul.f32 %v987, %v1001
    %v1003 = vrcp.pop %v996
    %v1004 = vmul.f32 %v988, %v1003
    %1009 = vrot.lane.b32.xlu0 %v998, 121
    %v1010 = vpop.permute.xlu0 %1009
    %1011 = vrot.lane.b32.xlu0 %v1000, 121
    %v1012 = vpop.permute.xlu0 %1011
    %1013 = vrot.lane.b32.xlu0 %v1002, 121
    %v1014 = vpop.permute.xlu0 %1013
    %1015 = vrot.lane.b32.xlu0 %v1004, 121
    %v1016 = vpop.permute.xlu0 %1015
    %v1021 = vadd.f32 %v931, %v1010
    %v1022 = vadd.f32 %v932, %v1012
    %v1023 = vadd.f32 %v933, %v1014
    %v1024 = vadd.f32 %v934, %v1016
    %v1025 = vadd.f32 %v989, 22500.0
    %v1026 = vadd.f32 %v990, 22500.0
    %v1027 = vadd.f32 %v991, 22500.0
    %v1028 = vadd.f32 %v992, 22500.0
    %v1029 = vrcp.pop %v1025
    %v1030 = vmul.f32 %v989, %v1029
    %v1031 = vrcp.pop %v1026
    %v1032 = vmul.f32 %v990, %v1031
    %v1033 = vrcp.pop %v1027
    %v1034 = vmul.f32 %v991, %v1033
    %v1035 = vrcp.pop %v1028
    %v1036 = vmul.f32 %v992, %v1035
    %1041 = vrot.lane.b32.xlu0 %v1030, 121
    %v1042 = vpop.permute.xlu0 %1041
    %1043 = vrot.lane.b32.xlu0 %v1032, 121
    %v1044 = vpop.permute.xlu0 %1043
    %1045 = vrot.lane.b32.xlu0 %v1034, 121
    %v1046 = vpop.permute.xlu0 %1045
    %1047 = vrot.lane.b32.xlu0 %v1036, 121
    %v1048 = vpop.permute.xlu0 %1047
    %v1053 = vadd.f32 %v1021, %v1042
    %v1054 = vadd.f32 %v1022, %v1044
    %v1055 = vadd.f32 %v1023, %v1046
    %v1056 = vadd.f32 %v1024, %v1048
    %v1057 = vmul.f32 %v82, 22500.0
    %v1058 = vmul.f32 %v83, 22500.0
    %v1059 = vmul.f32 %v84, 22500.0
    %v1060 = vmul.f32 %v85, 22500.0
    %1065 = vrot.lane.b32.xlu0 %v1053, 24
    %v1066 = vpop.permute.xlu0 %1065
    %1067 = vrot.lane.b32.xlu0 %v1054, 24
    %v1068 = vpop.permute.xlu0 %1067
    %1069 = vrot.lane.b32.xlu0 %v1055, 24
    %v1070 = vpop.permute.xlu0 %1069
    %1071 = vrot.lane.b32.xlu0 %v1056, 24
    %v1072 = vpop.permute.xlu0 %1071
    %v1077 = vmul.f32 %v1057, %v1066
    %v1078 = vmul.f32 %v1058, %v1068
    %v1079 = vmul.f32 %v1059, %v1070
    %v1080 = vmul.f32 %v1060, %v1072
    %1085 = vrot.lane.b32.xlu0 %v1077, 104
    %v1086 = vpop.permute.xlu0 %1085
    %1087 = vrot.lane.b32.xlu0 %v1078, 104
    %v1088 = vpop.permute.xlu0 %1087
    %1089 = vrot.lane.b32.xlu0 %v1079, 104
    %v1090 = vpop.permute.xlu0 %1089
    %1091 = vrot.lane.b32.xlu0 %v1080, 104
    %v1092 = vpop.permute.xlu0 %1091
    %vm1097 = vcmask 7168
    %v1098 = vsel %vm1097, %v1086, 0.0
    %v1099 = vsel %vm1097, %v1088, 0.0
    %v1100 = vadd.f32 %v1098, %v1099
    %v1101 = vsel %vm1097, %v1090, 0.0
    %v1102 = vadd.f32 %v1100, %v1101
    %v1103 = vsel %vm1097, %v1092, 0.0
    %v1104 = vadd.f32 %v1102, %v1103
    %1105 = vadd.xlane.f32.xlu0 %v1104
    %v1106 = vpop.xlane.xlu0 %1105
    %v1107 = vrot.slane %v1106, 4
    %v1108 = vadd.f32 %v1106, %v1107
    %v1109 = vrot.slane %v1108, 2
    %v1110 = vadd.f32 %v1108, %v1109
    %v1111 = vrot.slane %v1110, 1
    %v1112 = vadd.f32 %v1110, %v1111
    %s1113 = vtos %v1112
    %v1114 = vstv %s1113
    %1115 = vst [vmem:[#allocation8] sm:$0xff] %v1114
    // Predicated region
    $region26: #{tpu_custom_call.1} parent=1 // pred_check
      _
    $region27: #{tpu_custom_call.1} parent=1 // pred_check_branch
      %1117 = sbr.rel (0) target = $region29
    $region28: #{tpu_custom_call.1} parent=1 // pred_region
      %s1119 = ssub.s32 128, 128
      %1120 = vsyncadd [#allocation4], %s1119
      %s1122 = sshll.u32 [#allocation8], 4
      %s1123 = int_to_ptr.vmem [resolvable:$true] %s1122
      %1125 = dma.vmem_to_hbm [thread:$0]  %s1123, 128, %s3, [#allocation4]
    $region29: #{tpu_custom_call.1} parent=1 // pred_fallthru
      _
    // Predicated region
    $region30: #{tpu_custom_call.1} parent=1 // pred_check
      _
    $region31: #{tpu_custom_call.1} parent=1 // pred_check_branch
      %1127 = sbr.rel (0) target = $region33
    $region32: #{tpu_custom_call.1} parent=1 // pred_region
      %1128 = dma.done [#allocation4], 128
    $region33: #{tpu_custom_call.1} parent=1 // pred_fallthru
      _
    %1129 = vsyncpa [#allocation3], 1
    %1130 = vsyncpa [#allocation6], 1
    %1131 = vsyncpa [#allocation4], 1

</llo_original>
